<compile_context>
chip_gen: v6e
topology: v6e:2x2x1
jax: 0.10.0
libtpu: 0.0.40
codegen_flags: <defaults>
</compile_context>

<pallas_src>
import jax
import jax.numpy as jnp
import numpy as np
from jax.experimental import pallas as pl
from jax.experimental.pallas import tpu as pltpu


def _round_up(x: int, m: int) -> int:
    return ((x + m - 1) // m) * m


def _sublane_pack(dtype) -> int:
    # rows per native sublane tile: f32 -> 8, bf16 -> 16, int8/fp8 -> 32
    return max(1, (8 * 4) // jnp.dtype(dtype).itemsize)


def _vmem_capacity_bytes() -> int:
    try:
        cap = int(pltpu.get_tpu_info().vmem_capacity_bytes)
        if cap > 0:
            return cap
    except Exception:
        pass
    return 64 * 1024 * 1024   # v7x per-TC size; safe lower bound everywhere


def _vmem_estimate(C, kh, kw, hp_t, Wp, K, E, x_dtype, cdt, out_dtype) -> int:
    """Per-grid-step VMEM footprint (tiled-layout aware, double buffers counted)."""
    lane = 128
    xb = jnp.dtype(x_dtype).itemsize
    cb = jnp.dtype(cdt).itemsize
    ob = jnp.dtype(out_dtype).itemsize
    x_blk = C * hp_t * kh * _round_up(Wp, _sublane_pack(x_dtype)) * _round_up(kw, lane) * xb
    w_blk = _round_up(K, _sublane_pack(cdt)) * _round_up(E, lane) * cb
    b_blk = 8 * _round_up(E, lane) * 4
    o_blk = hp_t * _round_up(Wp, _sublane_pack(out_dtype)) * _round_up(E, lane) * ob
    scratch = hp_t * _round_up(Wp, _sublane_pack(cdt)) * _round_up(K, lane) * cb
    acc = hp_t * _round_up(Wp, 8) * _round_up(E, lane) * 4       # f32 accumulator value
    # Pallas double-buffers every pipelined operand — including the
    # constant-index weight / bias — hence the factor 2 on all blocks.
    return 2 * (x_blk + w_blk + b_blk + o_blk) + scratch + acc


def _choose_hp_tile(Hp, Wp, target_rows, budget, est_fn) -> int:
    """Largest divisor of Hp with ~target_rows rows/step that fits the budget."""
    divisors = [d for d in range(Hp, 0, -1) if Hp % d == 0]
    target = max(1, target_rows // max(Wp, 1))
    cands = [d for d in divisors if d <= target] or [1]
    for d in cands:
        if est_fn(d) <= budget:
            return d
    return cands[-1]


def _make_patch_embed_kernel(C, kh, kw, hp_t, Wp, K, E, cdt, out_dtype, merge_rows):
    def kernel(x_ref, w_ref, b_ref, out_ref, patch_ref):
        # ---- fused patchification: assemble the (hp_t, Wp, K) LHS tile in VMEM.
        # patch[p, wp, (c*kh + i)*kw + j] = x[b, c, (t*hp_t + p)*kh + i, wp*kw + j]
        # Static lane-offset stores only (robust lowering); MXU operands in `cdt`.
        for c in range(C):
            for i in range(kh):
                off = (c * kh + i) * kw
                patch_ref[:, :, off:off + kw] = x_ref[0, c, :, i, :, :].astype(cdt)

        w = w_ref[...]            # (K, E)  MXU operand dtype (bf16 by default)
        b = b_ref[...]            # (1, E)  f32 — epilogue stays f32 (v5e-friendly)

        if merge_rows:
            # One (hp_t*Wp, K) @ (K, E) matmul -> full row depth per weight load.
            # The leading-dim merge is layout-trivial (Wp % sublane pack == 0).
            lhs = patch_ref[...].reshape(hp_t * Wp, K)
            acc = jnp.dot(lhs, w, preferred_element_type=jnp.float32)
            out_ref[0] = (acc + b).astype(out_dtype).reshape(hp_t, Wp, E)
        else:
            # Tiny / unaligned Wp: per-patch-row matmuls (correctness path).
            for p in range(hp_t):
                acc = jnp.dot(patch_ref[p], w, preferred_element_type=jnp.float32)
                out_ref[0, p] = (acc + b).astype(out_dtype)

    return kernel


def patch_embed(x, weight, bias, kernel_size, stride, padding=(0, 0), *,
                compute_dtype=jnp.bfloat16, block_m=512):
    """Fused PatchEmbed forward.

    x: (B, C, H, W); weight: (embed_dim, C, kh, kw); bias: (embed_dim,).
    Returns (B, Hp, Wp, embed_dim) == Conv2d(kernel==stride).permute(0, 2, 3, 1).

    compute_dtype: MXU operand dtype (default bfloat16; accumulation and the
    bias add are f32, the output keeps x.dtype).
    """
    kh, kw = kernel_size
    sh, sw = stride
    assert (kh, kw) == (sh, sw), "PatchEmbed assumes kernel_size == stride"
    if padding != (0, 0):
        ph, pw = padding
        x = jnp.pad(x, ((0, 0), (0, 0), (ph, ph), (pw, pw)))

    B, C, H, W = x.shape
    E = weight.shape[0]
    assert weight.shape == (E, C, kh, kw)
    Hp, Wp = H // kh, W // kw
    assert Hp >= 1 and Wp >= 1, "input smaller than one patch"
    if H != Hp * kh or W != Wp * kw:              # VALID conv drops the remainder
        x = x[:, :, :Hp * kh, :Wp * kw]
    K = C * kh * kw

    out_dtype = x.dtype
    cdt = jnp.dtype(compute_dtype)

    # Layout-free dim splits (no HBM copy) — the kernel reads row-strips directly.
    x6 = x.reshape(B, C, Hp, kh, Wp, kw)
    # Weight / bias prep is tiny (K*E) next to the activation stream.
    w2 = jnp.transpose(weight.reshape(E, K)).astype(cdt)     # (K, E)
    b2 = bias.astype(jnp.float32).reshape(1, E)              # resident f32 bias

    # ---- generation-aware tiling: largest divisor-of-Hp row tile that fits.
    cap = _vmem_capacity_bytes()
    budget = int(cap * 0.6)
    est = lambda t: _vmem_estimate(C, kh, kw, t, Wp, K, E, x.dtype, cdt, out_dtype)
    hp_t = _choose_hp_tile(Hp, Wp, block_m, budget, est)
    grid = (B, Hp // hp_t)

    packs = (_sublane_pack(cdt), 8, _sublane_pack(out_dtype))
    merge_rows = (hp_t == 1) or all(Wp % p == 0 for p in packs)

    kernel = _make_patch_embed_kernel(C, kh, kw, hp_t, Wp, K, E, cdt, out_dtype,
                                      merge_rows)

    cost = pl.CostEstimate(
        flops=2 * B * Hp * Wp * K * E,
        transcendentals=0,
        bytes_accessed=(B * C * Hp * kh * Wp * kw * jnp.dtype(x.dtype).itemsize
                        + K * E * cdt.itemsize
                        + B * Hp * Wp * E * jnp.dtype(out_dtype).itemsize),
    )

    return pl.pallas_call(
        kernel,
        out_shape=jax.ShapeDtypeStruct((B, Hp, Wp, E), out_dtype),
        grid_spec=pltpu.PrefetchScalarGridSpec(
            num_scalar_prefetch=0,
            grid=grid,
            in_specs=[
                # Streamed NCHW row-strip: (C, hp_t, kh, Wp, kw) per step.
                pl.BlockSpec((1, C, hp_t, kh, Wp, kw),
                             lambda b, t: (b, 0, t, 0, 0, 0)),
                # Weight / bias: constant index -> VMEM resident across steps.
                pl.BlockSpec((K, E), lambda b, t: (0, 0)),
                pl.BlockSpec((1, E), lambda b, t: (0, 0)),
            ],
            out_specs=pl.BlockSpec((1, hp_t, Wp, E), lambda b, t: (b, t, 0, 0)),
            scratch_shapes=[pltpu.VMEM((hp_t, Wp, K), cdt)],
        ),
        compiler_params=pltpu.CompilerParams(
            dimension_semantics=("parallel", "parallel"),
            vmem_limit_bytes=min(int(cap * 0.8), 100 * 1024 * 1024),
        ),
        cost_estimate=cost,
    )(x6, w2, b2)


def _reference(x, weight, bias, kh, kw):
    """Exact float64 reference of Conv2d(kernel==stride) + permute(0,2,3,1)."""
    xn = np.asarray(x, dtype=np.float64)
    wn = np.asarray(weight, dtype=np.float64)
    bn = np.asarray(bias, dtype=np.float64)
    B, C, H, W = xn.shape
    E = wn.shape[0]
    Hp, Wp = H // kh, W // kw
    p = xn[:, :, :Hp * kh, :Wp * kw].reshape(B, C, Hp, kh, Wp, kw)
    p = p.transpose(0, 2, 4, 1, 3, 5).reshape(B, Hp, Wp, C * kh * kw)
    return p @ wn.reshape(E, -1).T + bn


if __name__ == "__main__":
    key = jax.random.PRNGKey(0)

    def run_case(case_key, B, C, H, W, patch, E):
        kx, kwt, kb = jax.random.split(case_key, 3)
        kh, kw = patch
        # Integer-valued data: the projection is exact in both the bf16 and the
        # f32 operand paths (all values / partial sums exactly representable),
        # so the check is tight and precision-independent.
        x = jax.random.randint(kx, (B, C, H, W), -2, 3).astype(jnp.float32)
        weight = jax.random.randint(kwt, (E, C, kh, kw), -1, 2).astype(jnp.float32)
        bias = jax.random.randint(kb, (E,), -3, 4).astype(jnp.float32)
        ref = _reference(x, weight, bias, kh, kw)

        # Explicit f32 MXU-operand path.
        out = jax.block_until_ready(
            patch_embed(x, weight, bias, patch, patch, compute_dtype=jnp.float32))
        assert out.shape == ref.shape
        err = np.max(np.abs(np.asarray(out, np.float64) - ref))
        assert err < 1e-4, f"f32 path mismatch: {err}"

        # Default path: bf16 MXU operands, f32 accumulation (preferred on TPU).
        out_bf = jax.block_until_ready(patch_embed(x, weight, bias, patch, patch))
        assert out_bf.shape == ref.shape
        err = np.max(np.abs(np.asarray(out_bf, np.float64) - ref))
        assert err < 1e-3, f"bf16 path mismatch: {err}"

    k1, k2 = jax.random.split(key)
    # Small shapes consistent with the module (exercises the per-row dot path).
    run_case(k1, B=2, C=4, H=16, W=16, patch=(4, 4), E=32)
    # Wp aligned to the sublane pack (exercises the merged single-matmul path).
    run_case(k2, B=2, C=3, H=32, W=32, patch=(2, 2), E=64)

    print("KERNEL_OK")
</pallas_src>

<mosaic_0001>
module attributes {stable_mosaic.version = 11 : i64} {
  func.func @kernel(%arg0: i32, %arg1: i32, %arg2: memref<1x4x4x4x4x4xf32, #tpu.memory_space<vmem>>, %arg3: memref<64x32xf32, #tpu.memory_space<vmem>>, %arg4: memref<1x32xf32, #tpu.memory_space<vmem>>, %arg5: memref<1x4x4x32xf32, #tpu.memory_space<vmem>>, %arg6: memref<4x4x64xf32, #tpu.memory_space<vmem>>) attributes {dimension_semantics = [#tpu.dimension_semantics<parallel>, #tpu.dimension_semantics<parallel>], iteration_bounds = array<i64: 2, 1>, scalar_prefetch = 0 : i64, scratch_operands = 1 : i64, tpu.core_type = #tpu.core_type<tc>, window_params = [{transform_indices = @transform_0, window_bounds = array<i64: 1, 4, 4, 4, 4, 4>}, {pipeline_mode = #tpu.pipeline_mode<synchronous>, transform_indices = @transform_1, window_bounds = array<i64: 64, 32>}, {pipeline_mode = #tpu.pipeline_mode<synchronous>, transform_indices = @transform_2, window_bounds = array<i64: 1, 32>}, {transform_indices = @transform_3, window_bounds = array<i64: 1, 4, 4, 32>}]} {
    %c0 = arith.constant 0 : index
    %c0_0 = arith.constant 0 : index
    %c0_1 = arith.constant 0 : index
    %c0_2 = arith.constant 0 : index
    %c0_3 = arith.constant 0 : index
    %c0_4 = arith.constant 0 : index
    %0 = vector.load %arg2[%c0, %c0_0, %c0_1, %c0_2, %c0_3, %c0_4] : memref<1x4x4x4x4x4xf32, #tpu.memory_space<vmem>>, vector<1x1x4x1x4x4xf32>
    %1 = vector.shape_cast %0 : vector<1x1x4x1x4x4xf32> to vector<4x4x4xf32>
    %c0_5 = arith.constant 0 : index
    %c0_6 = arith.constant 0 : index
    %c0_7 = arith.constant 0 : index
    %2 = vector.load %arg6[%c0_5, %c0_6, %c0_7] : memref<4x4x64xf32, #tpu.memory_space<vmem>>, vector<4x4x4xf32>
    tpu.vector_store %arg6[%c0_5, %c0_6, %c0_7], %1 {strides = array<i32>} : memref<4x4x64xf32, #tpu.memory_space<vmem>>, vector<4x4x4xf32>,
    %c0_8 = arith.constant 0 : index
    %c0_9 = arith.constant 0 : index
    %c0_10 = arith.constant 0 : index
    %c1 = arith.constant 1 : index
    %c0_11 = arith.constant 0 : index
    %c0_12 = arith.constant 0 : index
    %3 = vector.load %arg2[%c0_8, %c0_9, %c0_10, %c1, %c0_11, %c0_12] : memref<1x4x4x4x4x4xf32, #tpu.memory_space<vmem>>, vector<1x1x4x1x4x4xf32>
    %4 = vector.shape_cast %3 : vector<1x1x4x1x4x4xf32> to vector<4x4x4xf32>
    %c0_13 = arith.constant 0 : index
    %c0_14 = arith.constant 0 : index
    %c4 = arith.constant 4 : index
    %5 = vector.load %arg6[%c0_13, %c0_14, %c4] : memref<4x4x64xf32, #tpu.memory_space<vmem>>, vector<4x4x4xf32>
    tpu.vector_store %arg6[%c0_13, %c0_14, %c4], %4 {strides = array<i32>} : memref<4x4x64xf32, #tpu.memory_space<vmem>>, vector<4x4x4xf32>,
    %c0_15 = arith.constant 0 : index
    %c0_16 = arith.constant 0 : index
    %c0_17 = arith.constant 0 : index
    %c2 = arith.constant 2 : index
    %c0_18 = arith.constant 0 : index
    %c0_19 = arith.constant 0 : index
    %6 = vector.load %arg2[%c0_15, %c0_16, %c0_17, %c2, %c0_18, %c0_19] : memref<1x4x4x4x4x4xf32, #tpu.memory_space<vmem>>, vector<1x1x4x1x4x4xf32>
    %7 = vector.shape_cast %6 : vector<1x1x4x1x4x4xf32> to vector<4x4x4xf32>
    %c0_20 = arith.constant 0 : index
    %c0_21 = arith.constant 0 : index
    %c8 = arith.constant 8 : index
    %8 = vector.load %arg6[%c0_20, %c0_21, %c8] : memref<4x4x64xf32, #tpu.memory_space<vmem>>, vector<4x4x4xf32>
    tpu.vector_store %arg6[%c0_20, %c0_21, %c8], %7 {strides = array<i32>} : memref<4x4x64xf32, #tpu.memory_space<vmem>>, vector<4x4x4xf32>,
    %c0_22 = arith.constant 0 : index
    %c0_23 = arith.constant 0 : index
    %c0_24 = arith.constant 0 : index
    %c3 = arith.constant 3 : index
    %c0_25 = arith.constant 0 : index
    %c0_26 = arith.constant 0 : index
    %9 = vector.load %arg2[%c0_22, %c0_23, %c0_24, %c3, %c0_25, %c0_26] : memref<1x4x4x4x4x4xf32, #tpu.memory_space<vmem>>, vector<1x1x4x1x4x4xf32>
    %10 = vector.shape_cast %9 : vector<1x1x4x1x4x4xf32> to vector<4x4x4xf32>
    %c0_27 = arith.constant 0 : index
    %c0_28 = arith.constant 0 : index
    %c12 = arith.constant 12 : index
    %11 = vector.load %arg6[%c0_27, %c0_28, %c12] : memref<4x4x64xf32, #tpu.memory_space<vmem>>, vector<4x4x4xf32>
    tpu.vector_store %arg6[%c0_27, %c0_28, %c12], %10 {strides = array<i32>} : memref<4x4x64xf32, #tpu.memory_space<vmem>>, vector<4x4x4xf32>,
    %c0_29 = arith.constant 0 : index
    %c1_30 = arith.constant 1 : index
    %c0_31 = arith.constant 0 : index
    %c0_32 = arith.constant 0 : index
    %c0_33 = arith.constant 0 : index
    %c0_34 = arith.constant 0 : index
    %12 = vector.load %arg2[%c0_29, %c1_30, %c0_31, %c0_32, %c0_33, %c0_34] : memref<1x4x4x4x4x4xf32, #tpu.memory_space<vmem>>, vector<1x1x4x1x4x4xf32>
    %13 = vector.shape_cast %12 : vector<1x1x4x1x4x4xf32> to vector<4x4x4xf32>
    %c0_35 = arith.constant 0 : index
    %c0_36 = arith.constant 0 : index
    %c16 = arith.constant 16 : index
    %14 = vector.load %arg6[%c0_35, %c0_36, %c16] : memref<4x4x64xf32, #tpu.memory_space<vmem>>, vector<4x4x4xf32>
    tpu.vector_store %arg6[%c0_35, %c0_36, %c16], %13 {strides = array<i32>} : memref<4x4x64xf32, #tpu.memory_space<vmem>>, vector<4x4x4xf32>,
    %c0_37 = arith.constant 0 : index
    %c1_38 = arith.constant 1 : index
    %c0_39 = arith.constant 0 : index
    %c1_40 = arith.constant 1 : index
    %c0_41 = arith.constant 0 : index
    %c0_42 = arith.constant 0 : index
    %15 = vector.load %arg2[%c0_37, %c1_38, %c0_39, %c1_40, %c0_41, %c0_42] : memref<1x4x4x4x4x4xf32, #tpu.memory_space<vmem>>, vector<1x1x4x1x4x4xf32>
    %16 = vector.shape_cast %15 : vector<1x1x4x1x4x4xf32> to vector<4x4x4xf32>
    %c0_43 = arith.constant 0 : index
    %c0_44 = arith.constant 0 : index
    %c20 = arith.constant 20 : index
    %17 = vector.load %arg6[%c0_43, %c0_44, %c20] : memref<4x4x64xf32, #tpu.memory_space<vmem>>, vector<4x4x4xf32>
    tpu.vector_store %arg6[%c0_43, %c0_44, %c20], %16 {strides = array<i32>} : memref<4x4x64xf32, #tpu.memory_space<vmem>>, vector<4x4x4xf32>,
    %c0_45 = arith.constant 0 : index
    %c1_46 = arith.constant 1 : index
    %c0_47 = arith.constant 0 : index
    %c2_48 = arith.constant 2 : index
    %c0_49 = arith.constant 0 : index
    %c0_50 = arith.constant 0 : index
    %18 = vector.load %arg2[%c0_45, %c1_46, %c0_47, %c2_48, %c0_49, %c0_50] : memref<1x4x4x4x4x4xf32, #tpu.memory_space<vmem>>, vector<1x1x4x1x4x4xf32>
    %19 = vector.shape_cast %18 : vector<1x1x4x1x4x4xf32> to vector<4x4x4xf32>
    %c0_51 = arith.constant 0 : index
    %c0_52 = arith.constant 0 : index
    %c24 = arith.constant 24 : index
    %20 = vector.load %arg6[%c0_51, %c0_52, %c24] : memref<4x4x64xf32, #tpu.memory_space<vmem>>, vector<4x4x4xf32>
    tpu.vector_store %arg6[%c0_51, %c0_52, %c24], %19 {strides = array<i32>} : memref<4x4x64xf32, #tpu.memory_space<vmem>>, vector<4x4x4xf32>,
    %c0_53 = arith.constant 0 : index
    %c1_54 = arith.constant 1 : index
    %c0_55 = arith.constant 0 : index
    %c3_56 = arith.constant 3 : index
    %c0_57 = arith.constant 0 : index
    %c0_58 = arith.constant 0 : index
    %21 = vector.load %arg2[%c0_53, %c1_54, %c0_55, %c3_56, %c0_57, %c0_58] : memref<1x4x4x4x4x4xf32, #tpu.memory_space<vmem>>, vector<1x1x4x1x4x4xf32>
    %22 = vector.shape_cast %21 : vector<1x1x4x1x4x4xf32> to vector<4x4x4xf32>
    %c0_59 = arith.constant 0 : index
    %c0_60 = arith.constant 0 : index
    %c28 = arith.constant 28 : index
    %23 = vector.load %arg6[%c0_59, %c0_60, %c28] : memref<4x4x64xf32, #tpu.memory_space<vmem>>, vector<4x4x4xf32>
    tpu.vector_store %arg6[%c0_59, %c0_60, %c28], %22 {strides = array<i32>} : memref<4x4x64xf32, #tpu.memory_space<vmem>>, vector<4x4x4xf32>,
    %c0_61 = arith.constant 0 : index
    %c2_62 = arith.constant 2 : index
    %c0_63 = arith.constant 0 : index
    %c0_64 = arith.constant 0 : index
    %c0_65 = arith.constant 0 : index
    %c0_66 = arith.constant 0 : index
    %24 = vector.load %arg2[%c0_61, %c2_62, %c0_63, %c0_64, %c0_65, %c0_66] : memref<1x4x4x4x4x4xf32, #tpu.memory_space<vmem>>, vector<1x1x4x1x4x4xf32>
    %25 = vector.shape_cast %24 : vector<1x1x4x1x4x4xf32> to vector<4x4x4xf32>
    %c0_67 = arith.constant 0 : index
    %c0_68 = arith.constant 0 : index
    %c32 = arith.constant 32 : index
    %26 = vector.load %arg6[%c0_67, %c0_68, %c32] : memref<4x4x64xf32, #tpu.memory_space<vmem>>, vector<4x4x4xf32>
    tpu.vector_store %arg6[%c0_67, %c0_68, %c32], %25 {strides = array<i32>} : memref<4x4x64xf32, #tpu.memory_space<vmem>>, vector<4x4x4xf32>,
    %c0_69 = arith.constant 0 : index
    %c2_70 = arith.constant 2 : index
    %c0_71 = arith.constant 0 : index
    %c1_72 = arith.constant 1 : index
    %c0_73 = arith.constant 0 : index
    %c0_74 = arith.constant 0 : index
    %27 = vector.load %arg2[%c0_69, %c2_70, %c0_71, %c1_72, %c0_73, %c0_74] : memref<1x4x4x4x4x4xf32, #tpu.memory_space<vmem>>, vector<1x1x4x1x4x4xf32>
    %28 = vector.shape_cast %27 : vector<1x1x4x1x4x4xf32> to vector<4x4x4xf32>
    %c0_75 = arith.constant 0 : index
    %c0_76 = arith.constant 0 : index
    %c36 = arith.constant 36 : index
    %29 = vector.load %arg6[%c0_75, %c0_76, %c36] : memref<4x4x64xf32, #tpu.memory_space<vmem>>, vector<4x4x4xf32>
    tpu.vector_store %arg6[%c0_75, %c0_76, %c36], %28 {strides = array<i32>} : memref<4x4x64xf32, #tpu.memory_space<vmem>>, vector<4x4x4xf32>,
    %c0_77 = arith.constant 0 : index
    %c2_78 = arith.constant 2 : index
    %c0_79 = arith.constant 0 : index
    %c2_80 = arith.constant 2 : index
    %c0_81 = arith.constant 0 : index
    %c0_82 = arith.constant 0 : index
    %30 = vector.load %arg2[%c0_77, %c2_78, %c0_79, %c2_80, %c0_81, %c0_82] : memref<1x4x4x4x4x4xf32, #tpu.memory_space<vmem>>, vector<1x1x4x1x4x4xf32>
    %31 = vector.shape_cast %30 : vector<1x1x4x1x4x4xf32> to vector<4x4x4xf32>
    %c0_83 = arith.constant 0 : index
    %c0_84 = arith.constant 0 : index
    %c40 = arith.constant 40 : index
    %32 = vector.load %arg6[%c0_83, %c0_84, %c40] : memref<4x4x64xf32, #tpu.memory_space<vmem>>, vector<4x4x4xf32>
    tpu.vector_store %arg6[%c0_83, %c0_84, %c40], %31 {strides = array<i32>} : memref<4x4x64xf32, #tpu.memory_space<vmem>>, vector<4x4x4xf32>,
    %c0_85 = arith.constant 0 : index
    %c2_86 = arith.constant 2 : index
    %c0_87 = arith.constant 0 : index
    %c3_88 = arith.constant 3 : index
    %c0_89 = arith.constant 0 : index
    %c0_90 = arith.constant 0 : index
    %33 = vector.load %arg2[%c0_85, %c2_86, %c0_87, %c3_88, %c0_89, %c0_90] : memref<1x4x4x4x4x4xf32, #tpu.memory_space<vmem>>, vector<1x1x4x1x4x4xf32>
    %34 = vector.shape_cast %33 : vector<1x1x4x1x4x4xf32> to vector<4x4x4xf32>
    %c0_91 = arith.constant 0 : index
    %c0_92 = arith.constant 0 : index
    %c44 = arith.constant 44 : index
    %35 = vector.load %arg6[%c0_91, %c0_92, %c44] : memref<4x4x64xf32, #tpu.memory_space<vmem>>, vector<4x4x4xf32>
    tpu.vector_store %arg6[%c0_91, %c0_92, %c44], %34 {strides = array<i32>} : memref<4x4x64xf32, #tpu.memory_space<vmem>>, vector<4x4x4xf32>,
    %c0_93 = arith.constant 0 : index
    %c3_94 = arith.constant 3 : index
    %c0_95 = arith.constant 0 : index
    %c0_96 = arith.constant 0 : index
    %c0_97 = arith.constant 0 : index
    %c0_98 = arith.constant 0 : index
    %36 = vector.load %arg2[%c0_93, %c3_94, %c0_95, %c0_96, %c0_97, %c0_98] : memref<1x4x4x4x4x4xf32, #tpu.memory_space<vmem>>, vector<1x1x4x1x4x4xf32>
    %37 = vector.shape_cast %36 : vector<1x1x4x1x4x4xf32> to vector<4x4x4xf32>
    %c0_99 = arith.constant 0 : index
    %c0_100 = arith.constant 0 : index
    %c48 = arith.constant 48 : index
    %38 = vector.load %arg6[%c0_99, %c0_100, %c48] : memref<4x4x64xf32, #tpu.memory_space<vmem>>, vector<4x4x4xf32>
    tpu.vector_store %arg6[%c0_99, %c0_100, %c48], %37 {strides = array<i32>} : memref<4x4x64xf32, #tpu.memory_space<vmem>>, vector<4x4x4xf32>,
    %c0_101 = arith.constant 0 : index
    %c3_102 = arith.constant 3 : index
    %c0_103 = arith.constant 0 : index
    %c1_104 = arith.constant 1 : index
    %c0_105 = arith.constant 0 : index
    %c0_106 = arith.constant 0 : index
    %39 = vector.load %arg2[%c0_101, %c3_102, %c0_103, %c1_104, %c0_105, %c0_106] : memref<1x4x4x4x4x4xf32, #tpu.memory_space<vmem>>, vector<1x1x4x1x4x4xf32>
    %40 = vector.shape_cast %39 : vector<1x1x4x1x4x4xf32> to vector<4x4x4xf32>
    %c0_107 = arith.constant 0 : index
    %c0_108 = arith.constant 0 : index
    %c52 = arith.constant 52 : index
    %41 = vector.load %arg6[%c0_107, %c0_108, %c52] : memref<4x4x64xf32, #tpu.memory_space<vmem>>, vector<4x4x4xf32>
    tpu.vector_store %arg6[%c0_107, %c0_108, %c52], %40 {strides = array<i32>} : memref<4x4x64xf32, #tpu.memory_space<vmem>>, vector<4x4x4xf32>,
    %c0_109 = arith.constant 0 : index
    %c3_110 = arith.constant 3 : index
    %c0_111 = arith.constant 0 : index
    %c2_112 = arith.constant 2 : index
    %c0_113 = arith.constant 0 : index
    %c0_114 = arith.constant 0 : index
    %42 = vector.load %arg2[%c0_109, %c3_110, %c0_111, %c2_112, %c0_113, %c0_114] : memref<1x4x4x4x4x4xf32, #tpu.memory_space<vmem>>, vector<1x1x4x1x4x4xf32>
    %43 = vector.shape_cast %42 : vector<1x1x4x1x4x4xf32> to vector<4x4x4xf32>
    %c0_115 = arith.constant 0 : index
    %c0_116 = arith.constant 0 : index
    %c56 = arith.constant 56 : index
    %44 = vector.load %arg6[%c0_115, %c0_116, %c56] : memref<4x4x64xf32, #tpu.memory_space<vmem>>, vector<4x4x4xf32>
    tpu.vector_store %arg6[%c0_115, %c0_116, %c56], %43 {strides = array<i32>} : memref<4x4x64xf32, #tpu.memory_space<vmem>>, vector<4x4x4xf32>,
    %c0_117 = arith.constant 0 : index
    %c3_118 = arith.constant 3 : index
    %c0_119 = arith.constant 0 : index
    %c3_120 = arith.constant 3 : index
    %c0_121 = arith.constant 0 : index
    %c0_122 = arith.constant 0 : index
    %45 = vector.load %arg2[%c0_117, %c3_118, %c0_119, %c3_120, %c0_121, %c0_122] : memref<1x4x4x4x4x4xf32, #tpu.memory_space<vmem>>, vector<1x1x4x1x4x4xf32>
    %46 = vector.shape_cast %45 : vector<1x1x4x1x4x4xf32> to vector<4x4x4xf32>
    %c0_123 = arith.constant 0 : index
    %c0_124 = arith.constant 0 : index
    %c60 = arith.constant 60 : index
    %47 = vector.load %arg6[%c0_123, %c0_124, %c60] : memref<4x4x64xf32, #tpu.memory_space<vmem>>, vector<4x4x4xf32>
    tpu.vector_store %arg6[%c0_123, %c0_124, %c60], %46 {strides = array<i32>} : memref<4x4x64xf32, #tpu.memory_space<vmem>>, vector<4x4x4xf32>,
    %c0_125 = arith.constant 0 : index
    %c0_126 = arith.constant 0 : index
    %48 = vector.load %arg3[%c0_125, %c0_126] : memref<64x32xf32, #tpu.memory_space<vmem>>, vector<64x32xf32>
    %c0_127 = arith.constant 0 : index
    %c0_128 = arith.constant 0 : index
    %49 = vector.load %arg4[%c0_127, %c0_128] : memref<1x32xf32, #tpu.memory_space<vmem>>, vector<1x32xf32>
    %c0_129 = arith.constant 0 : index
    %c0_130 = arith.constant 0 : index
    %c0_131 = arith.constant 0 : index
    %50 = vector.load %arg6[%c0_129, %c0_130, %c0_131] : memref<4x4x64xf32, #tpu.memory_space<vmem>>, vector<1x4x64xf32>
    %51 = vector.shape_cast %50 : vector<1x4x64xf32> to vector<4x64xf32>
    %cst = arith.constant dense<0.000000e+00> : vector<4x32xf32>
    %52 = tpu.matmul %51, %48, %cst {dimension_numbers = #tpu.dot_dimension_numbers<[1], [0], [0], [1], [0, 0, 1, 1], [], []>} : vector<4x64xf32>, vector<64x32xf32>, vector<4x32xf32> -> vector<4x32xf32>
    %53 = vector.broadcast %49 : vector<1x32xf32> to vector<4x32xf32>
    %54 = arith.addf %52, %53 : vector<4x32xf32>
    %c0_132 = arith.constant 0 : index
    %c0_133 = arith.constant 0 : index
    %c0_134 = arith.constant 0 : index
    %c0_135 = arith.constant 0 : index
    %55 = vector.load %arg5[%c0_132, %c0_133, %c0_134, %c0_135] : memref<1x4x4x32xf32, #tpu.memory_space<vmem>>, vector<1x1x4x32xf32>
    %56 = vector.shape_cast %55 : vector<1x1x4x32xf32> to vector<4x32xf32>
    %57 = vector.shape_cast %54 : vector<4x32xf32> to vector<1x1x4x32xf32>
    tpu.vector_store %arg5[%c0_132, %c0_133, %c0_134, %c0_135], %57 {strides = array<i32>} : memref<1x4x4x32xf32, #tpu.memory_space<vmem>>, vector<1x1x4x32xf32>,
    %c1_136 = arith.constant 1 : index
    %c0_137 = arith.constant 0 : index
    %c0_138 = arith.constant 0 : index
    %58 = vector.load %arg6[%c1_136, %c0_137, %c0_138] : memref<4x4x64xf32, #tpu.memory_space<vmem>>, vector<1x4x64xf32>
    %59 = vector.shape_cast %58 : vector<1x4x64xf32> to vector<4x64xf32>
    %cst_139 = arith.constant dense<0.000000e+00> : vector<4x32xf32>
    %60 = tpu.matmul %59, %48, %cst_139 {dimension_numbers = #tpu.dot_dimension_numbers<[1], [0], [0], [1], [0, 0, 1, 1], [], []>} : vector<4x64xf32>, vector<64x32xf32>, vector<4x32xf32> -> vector<4x32xf32>
    %61 = vector.broadcast %49 : vector<1x32xf32> to vector<4x32xf32>
    %62 = arith.addf %60, %61 : vector<4x32xf32>
    %c0_140 = arith.constant 0 : index
    %c1_141 = arith.constant 1 : index
    %c0_142 = arith.constant 0 : index
    %c0_143 = arith.constant 0 : index
    %63 = vector.load %arg5[%c0_140, %c1_141, %c0_142, %c0_143] : memref<1x4x4x32xf32, #tpu.memory_space<vmem>>, vector<1x1x4x32xf32>
    %64 = vector.shape_cast %63 : vector<1x1x4x32xf32> to vector<4x32xf32>
    %65 = vector.shape_cast %62 : vector<4x32xf32> to vector<1x1x4x32xf32>
    tpu.vector_store %arg5[%c0_140, %c1_141, %c0_142, %c0_143], %65 {strides = array<i32>} : memref<1x4x4x32xf32, #tpu.memory_space<vmem>>, vector<1x1x4x32xf32>,
    %c2_144 = arith.constant 2 : index
    %c0_145 = arith.constant 0 : index
    %c0_146 = arith.constant 0 : index
    %66 = vector.load %arg6[%c2_144, %c0_145, %c0_146] : memref<4x4x64xf32, #tpu.memory_space<vmem>>, vector<1x4x64xf32>
    %67 = vector.shape_cast %66 : vector<1x4x64xf32> to vector<4x64xf32>
    %cst_147 = arith.constant dense<0.000000e+00> : vector<4x32xf32>
    %68 = tpu.matmul %67, %48, %cst_147 {dimension_numbers = #tpu.dot_dimension_numbers<[1], [0], [0], [1], [0, 0, 1, 1], [], []>} : vector<4x64xf32>, vector<64x32xf32>, vector<4x32xf32> -> vector<4x32xf32>
    %69 = vector.broadcast %49 : vector<1x32xf32> to vector<4x32xf32>
    %70 = arith.addf %68, %69 : vector<4x32xf32>
    %c0_148 = arith.constant 0 : index
    %c2_149 = arith.constant 2 : index
    %c0_150 = arith.constant 0 : index
    %c0_151 = arith.constant 0 : index
    %71 = vector.load %arg5[%c0_148, %c2_149, %c0_150, %c0_151] : memref<1x4x4x32xf32, #tpu.memory_space<vmem>>, vector<1x1x4x32xf32>
    %72 = vector.shape_cast %71 : vector<1x1x4x32xf32> to vector<4x32xf32>
    %73 = vector.shape_cast %70 : vector<4x32xf32> to vector<1x1x4x32xf32>
    tpu.vector_store %arg5[%c0_148, %c2_149, %c0_150, %c0_151], %73 {strides = array<i32>} : memref<1x4x4x32xf32, #tpu.memory_space<vmem>>, vector<1x1x4x32xf32>,
    %c3_152 = arith.constant 3 : index
    %c0_153 = arith.constant 0 : index
    %c0_154 = arith.constant 0 : index
    %74 = vector.load %arg6[%c3_152, %c0_153, %c0_154] : memref<4x4x64xf32, #tpu.memory_space<vmem>>, vector<1x4x64xf32>
    %75 = vector.shape_cast %74 : vector<1x4x64xf32> to vector<4x64xf32>
    %cst_155 = arith.constant dense<0.000000e+00> : vector<4x32xf32>
    %76 = tpu.matmul %75, %48, %cst_155 {dimension_numbers = #tpu.dot_dimension_numbers<[1], [0], [0], [1], [0, 0, 1, 1], [], []>} : vector<4x64xf32>, vector<64x32xf32>, vector<4x32xf32> -> vector<4x32xf32>
    %77 = vector.broadcast %49 : vector<1x32xf32> to vector<4x32xf32>
    %78 = arith.addf %76, %77 : vector<4x32xf32>
    %c0_156 = arith.constant 0 : index
    %c3_157 = arith.constant 3 : index
    %c0_158 = arith.constant 0 : index
    %c0_159 = arith.constant 0 : index
    %79 = vector.load %arg5[%c0_156, %c3_157, %c0_158, %c0_159] : memref<1x4x4x32xf32, #tpu.memory_space<vmem>>, vector<1x1x4x32xf32>
    %80 = vector.shape_cast %79 : vector<1x1x4x32xf32> to vector<4x32xf32>
    %81 = vector.shape_cast %78 : vector<4x32xf32> to vector<1x1x4x32xf32>
    tpu.vector_store %arg5[%c0_156, %c3_157, %c0_158, %c0_159], %81 {strides = array<i32>} : memref<1x4x4x32xf32, #tpu.memory_space<vmem>>, vector<1x1x4x32xf32>,
    return
  }
  func.func @transform_0(%arg0: i32, %arg1: i32) -> (i32, i32, i32, i32, i32, i32) {
    %c0_i32 = arith.constant 0 : i32
    %c0_i32_0 = arith.constant 0 : i32
    %c0_i32_1 = arith.constant 0 : i32
    %c0_i32_2 = arith.constant 0 : i32
    %c0_i32_3 = arith.constant 0 : i32
    return %arg0, %c0_i32, %arg1, %c0_i32_0, %c0_i32_1, %c0_i32_2 : i32, i32, i32, i32, i32, i32
  }
  func.func @transform_1(%arg0: i32, %arg1: i32) -> (i32, i32) {
    %c0_i32 = arith.constant 0 : i32
    %c0_i32_0 = arith.constant 0 : i32
    %c0_i32_1 = arith.constant 0 : i32
    return %c0_i32, %c0_i32_0 : i32, i32
  }
  func.func @transform_2(%arg0: i32, %arg1: i32) -> (i32, i32) {
    %c0_i32 = arith.constant 0 : i32
    %c0_i32_0 = arith.constant 0 : i32
    %c0_i32_1 = arith.constant 0 : i32
    return %c0_i32, %c0_i32_0 : i32, i32
  }
  func.func @transform_3(%arg0: i32, %arg1: i32) -> (i32, i32, i32, i32) {
    %c0_i32 = arith.constant 0 : i32
    %c0_i32_0 = arith.constant 0 : i32
    %c0_i32_1 = arith.constant 0 : i32
    return %arg0, %arg1, %c0_i32, %c0_i32_0 : i32, i32, i32, i32
  }
}

</mosaic_0001>

<llo_original>
// kernel: tpu_custom_call.1
$region0: #{tpu_custom_call.1}
  #allocation0 [shape = 'u32[]', space=smem, size = 0x4, offset = 0x4, fixed_abs, tag = 'smem constant byte address 0x4 - core index']
  #allocation1 [shape = 'u32[144,128]{1,0:T(1,128)}', space=vmem, size = 0x12000, scoped, tag = 'internal scratch']
  #allocation2 [shape = 'f32[4,4,64]{2,1,0:T(4,128)}', space=vmem, size = 0x2000, scoped, tag = 'scratch operand']
  %s0 = inlined_call_operand.hbm [shape: f32[2,4,4,4,4,4], index: 0, kind: input, shape index: {}]
  %s1 = inlined_call_operand.vmem [shape: f32[64,32], index: 1, kind: input, shape index: {}]
  %s2 = inlined_call_operand.vmem [shape: f32[1,32], index: 2, kind: input, shape index: {}]
  %s3 = inlined_call_operand.hbm [shape: f32[2,4,4,32], index: 3, kind: output, shape index: {}]
  %s4 = sld [smem:[#allocation0]]
  $region49: #{tpu_custom_call.1} parent=0
    _
  %s6 = ssub.s32 1, %s4
  %s7 = scalar_select 0, %s6, %s4
  $region1: #{tpu_custom_call.1} parent=0
    #allocation3 [shape = 'u8[262144]{0}', space=vmem, size = 0x40000, scoped, tag = 'input window, operand 0']
    #allocation4 [shape = 's32[2]{0}', space=sflag, size = 0x8, scoped, tag = 'scoped memory for tpu_custom_call.1']
    #allocation5 [shape = 's32[2]{0}', space=sflag, size = 0x8, scoped, tag = 'scoped memory for tpu_custom_call.1']
    #allocation6 [shape = 'u8[16384]{0}', space=vmem, size = 0x4000, scoped, tag = 'output window, operand 0']
    %8 = vsyncpa [#allocation4], 0
    %s9 = scalar_lea.sflag [#allocation4], 1
    %10 = vsyncpa %s9, 0
    %11 = vsyncpa [#allocation5], 0
    %s12 = scalar_lea.sflag [#allocation5], 1
    %13 = vsyncpa %s12, 0
    loop: start=0, step=1, limit=4
    $region2: #{tpu_custom_call.1} parent=1 // loop_pre_header
      _
    $region3: #{tpu_custom_call.1} parent=1 // loop_header
      %s15 = sphi 0, %s19
      %p16 = scmp.ge.s32.totalorder %s15, 4
      %s22 = sphi 0, %s34
      %s23 = sphi 0, %s30
      %s24 = sphi 0, %s22
      %s25 = sphi 0, %s23
      %s26 = sphi 0, %s24
      %s27 = sphi 0, %s25
      %s39 = sphi 0, %s41
      %s42 = sphi 0, %s39
      %s43 = sphi 0, %s42
      %s59 = sphi 0, %s43
      %s63 = sphi 0, %s63
      %s65 = sphi 0, %s63
      %s66 = sphi 0, %s65
      %s80 = sphi 0, %s66
      %s84 = sphi 0, %s84
      %s86 = sphi 0, %s84
      %s87 = sphi 0, %s86
      %s101 = sphi 0, %s87
      %s109 = sphi 0, %s111
      %s112 = sphi 0, %s109
      %s113 = sphi 0, %s112
      %s129 = sphi 0, %s113
    $region4: #{tpu_custom_call.1} parent=1 // loop_header_branch
      %18 = sbr.rel (%p16) target = $region8
    $region5: #{tpu_custom_call.1} parent=1 // loop_body
      %s20 = ssub.s32 %s15, 1
      %s21 = ssub.s32 %s15, 2
      %s28 = sadd.s32 1, %s23
      %p29 = scmp.ge.s32.totalorder %s28, 1
      %s30 = scalar_select %p29, 0, %s28
      %s31 = sadd.s32 1, %s22
      %s32 = scalar_select %p29, %s31, %s22
      %p33 = scmp.ge.s32.totalorder %s32, 2
      %s34 = scalar_select %p33, 0, %s32
      %s35 = ssub.s32 %s22, %s34
      %s36 = ssub.s32 %s23, %s30
      %s37 = sor.u32 %s35, %s36
      %p38 = scmp.eq.s32.totalorder %s37, 0
      %s40 = sadd.s32 %s39, 1
      %s41 = scalar_select %p38, %s39, %s40
      %p44 = pneg %p38
      %p45 = scmp.eq.s32.totalorder %s15, 1
      %p46 = por %p44, %p45
      %p47 = scmp.ne.s32.totalorder %s39, %s42
      %p48 = scmp.eq.s32.totalorder %s15, 0
      %p49 = por %p47, %p48
      %p50 = scmp.ne.s32.totalorder %s39, %s42
      %p51 = scmp.eq.s32.totalorder %s20, 1
      %p52 = por %p50, %p51
      %p53 = scmp.ne.s32.totalorder %s42, %s43
      %p54 = scmp.eq.s32.totalorder %s20, 0
      %p55 = por %p53, %p54
      %p56 = scmp.ne.s32.totalorder %s42, %s43
      %p57 = scmp.eq.s32.totalorder %s21, 1
      %p58 = por %p56, %p57
      %p60 = scmp.ne.s32.totalorder %s43, %s59
      %p61 = scmp.eq.s32.totalorder %s21, 0
      %p62 = por %p60, %p61
      %s64 = sadd.s32 %s63, 1
      %p67 = scmp.eq.s32.totalorder %s15, 1
      %p68 = scmp.ne.s32.totalorder %s63, %s65
      %p69 = scmp.eq.s32.totalorder %s15, 0
      %p70 = por %p68, %p69
      %p71 = scmp.ne.s32.totalorder %s63, %s65
      %p72 = scmp.eq.s32.totalorder %s20, 1
      %p73 = por %p71, %p72
      %p74 = scmp.ne.s32.totalorder %s65, %s66
      %p75 = scmp.eq.s32.totalorder %s20, 0
      %p76 = por %p74, %p75
      %p77 = scmp.ne.s32.totalorder %s65, %s66
      %p78 = scmp.eq.s32.totalorder %s21, 1
      %p79 = por %p77, %p78
      %p81 = scmp.ne.s32.totalorder %s66, %s80
      %p82 = scmp.eq.s32.totalorder %s21, 0
      %p83 = por %p81, %p82
      %s85 = sadd.s32 %s84, 1
      %p88 = scmp.eq.s32.totalorder %s15, 1
      %p89 = scmp.ne.s32.totalorder %s84, %s86
      %p90 = scmp.eq.s32.totalorder %s15, 0
      %p91 = por %p89, %p90
      %p92 = scmp.ne.s32.totalorder %s84, %s86
      %p93 = scmp.eq.s32.totalorder %s20, 1
      %p94 = por %p92, %p93
      %p95 = scmp.ne.s32.totalorder %s86, %s87
      %p96 = scmp.eq.s32.totalorder %s20, 0
      %p97 = por %p95, %p96
      %p98 = scmp.ne.s32.totalorder %s86, %s87
      %p99 = scmp.eq.s32.totalorder %s21, 1
      %p100 = por %p98, %p99
      %p102 = scmp.ne.s32.totalorder %s87, %s101
      %p103 = scmp.eq.s32.totalorder %s21, 0
      %p104 = por %p102, %p103
      %s105 = ssub.s32 %s22, %s34
      %s106 = ssub.s32 %s23, %s30
      %s107 = sor.u32 %s105, %s106
      %p108 = scmp.eq.s32.totalorder %s107, 0
      %s110 = sadd.s32 %s109, 1
      %s111 = scalar_select %p108, %s109, %s110
      %p114 = pneg %p108
      %p115 = scmp.eq.s32.totalorder %s15, 1
      %p116 = por %p114, %p115
      %p117 = scmp.ne.s32.totalorder %s109, %s112
      %p118 = scmp.eq.s32.totalorder %s15, 0
      %p119 = por %p117, %p118
      %p120 = scmp.ne.s32.totalorder %s109, %s112
      %p121 = scmp.eq.s32.totalorder %s20, 1
      %p122 = por %p120, %p121
      %p123 = scmp.ne.s32.totalorder %s112, %s113
      %p124 = scmp.eq.s32.totalorder %s20, 0
      %p125 = por %p123, %p124
      %p126 = scmp.ne.s32.totalorder %s112, %s113
      %p127 = scmp.eq.s32.totalorder %s21, 1
      %p128 = por %p126, %p127
      %p130 = scmp.ne.s32.totalorder %s113, %s129
      %p131 = scmp.eq.s32.totalorder %s21, 0
      %p132 = por %p130, %p131
      %p133 = scmp.le.s32.totalorder 1, %s15
      %p134 = scmp.lt.s32.totalorder %s15, 3
      %p135 = pnand %p133, %p134
      %p136 = pneg %p135
      // Predicated region
      $region9: #{tpu_custom_call.1} parent=5 // pred_check
        _
      $region10: #{tpu_custom_call.1} parent=5 // pred_check_branch
        %138 = sbr.rel (%p135) target = $region12
      $region11: #{tpu_custom_call.1} parent=5 // pred_region
        %s139 = ssub.s32 %s15, 1
        // Predicated region
        $region13: #{tpu_custom_call.1} parent=11 // pred_check
          %p140 = pneg %p76
        $region14: #{tpu_custom_call.1} parent=11 // pred_check_branch
          %142 = sbr.rel (%p140) target = $region16
        $region15: #{tpu_custom_call.1} parent=11 // pred_region
          _
        $region16: #{tpu_custom_call.1} parent=11 // pred_fallthru
          _
        // Predicated region
        $region17: #{tpu_custom_call.1} parent=11 // pred_check
          %p143 = pneg %p97
        $region18: #{tpu_custom_call.1} parent=11 // pred_check_branch
          %145 = sbr.rel (%p143) target = $region20
        $region19: #{tpu_custom_call.1} parent=11 // pred_region
          _
        $region20: #{tpu_custom_call.1} parent=11 // pred_fallthru
          _
      $region12: #{tpu_custom_call.1} parent=5 // pred_fallthru
        _
      %p146 = scmp.lt.s32.totalorder %s15, 2
      // Predicated region
      $region21: #{tpu_custom_call.1} parent=5 // pred_check
        %p147 = pneg %p146
      $region22: #{tpu_custom_call.1} parent=5 // pred_check_branch
        %149 = sbr.rel (%p147) target = $region24
      $region23: #{tpu_custom_call.1} parent=5 // pred_region
        // Predicated region
        $region25: #{tpu_custom_call.1} parent=23 // pred_check
          %p150 = pneg %p49
        $region26: #{tpu_custom_call.1} parent=23 // pred_check_branch
          %152 = sbr.rel (%p150) target = $region28
        $region27: #{tpu_custom_call.1} parent=23 // pred_region
          %s153 = sand.u32 %s39, 1
          %s154 = scalar_lea.sflag [#allocation4], %s153
          %s155 = sand.u32 %s39, 1
          %s156 = smul.addr %s155, 256
          %s157 = scalar_lea.vmem [#allocation3], %s156
          %s158 = smul.u32 4, %s23
          %s160 = ssub.s32 4096, 4096
          %161 = vsyncadd %s154, %s160
          %s162 = smul.addr %s158, 4
          %s163 = smul.addr %s22, 64
          %s164 = sadd.s32 %s162, %s163
          %s165 = smul.addr %s164, 64
          %s166 = scalar_lea.hbm %s0, %s165
          %s167 = sshll.u32 %s157, 4
          %s168 = int_to_ptr.vmem [resolvable:$true] %s167
          %173 = dma.hbm_to_vmem [thread:$0]  %s166, 4096, %s168, %s154, 64, 64, 4
        $region28: #{tpu_custom_call.1} parent=23 // pred_fallthru
          _
      $region24: #{tpu_custom_call.1} parent=5 // pred_fallthru
        _
      %p174 = scmp.le.s32.totalorder 1, %s15
      %p175 = scmp.lt.s32.totalorder %s15, 3
      %p176 = pnand %p174, %p175
      %p177 = pneg %p176
      // Predicated region
      $region29: #{tpu_custom_call.1} parent=5 // pred_check
        _
      $region30: #{tpu_custom_call.1} parent=5 // pred_check_branch
        %179 = sbr.rel (%p176) target = $region32
      $region31: #{tpu_custom_call.1} parent=5 // pred_region
        %s180 = ssub.s32 %s15, 1
        %s181 = sand.u32 %s42, 1
        %s182 = scalar_lea.sflag [#allocation4], %s181
        %s183 = sand.u32 %s42, 1
        %s184 = smul.addr %s183, 256
        %s185 = scalar_lea.vmem [#allocation3], %s184
        // Predicated region
        $region33: #{tpu_custom_call.1} parent=31 // pred_check
          %p186 = pneg %p55
        $region34: #{tpu_custom_call.1} parent=31 // pred_check_branch
          %188 = sbr.rel (%p186) target = $region36
        $region35: #{tpu_custom_call.1} parent=31 // pred_region
          %189 = dma.done %s182, 4096
        $region36: #{tpu_custom_call.1} parent=31 // pred_fallthru
          _
        %s190 = sand.u32 %s42, 1
        %s191 = scalar_lea.sflag [#allocation4], %s190
        %s192 = sand.u32 %s42, 1
        %s193 = smul.addr %s192, 256
        %s194 = scalar_lea.vmem [#allocation3], %s193
        %p195 = pneg %p55
        %p196 = pneg %p52
        %p197 = pneg %p76
        %p198 = pneg %p73
        %p199 = pneg %p97
        %p200 = pneg %p94
        %p201 = pneg %p125
        %p202 = pneg %p122
        %s203 = sand.u32 %s112, 1
        %s204 = scalar_lea.sflag [#allocation5], %s203
        %s205 = sand.u32 %s112, 1
        %s206 = smul.addr %s205, 16
        %s207 = scalar_lea.vmem [#allocation6], %s206
        %s208 = smul.u32 4, %s25
        %s209 = smul.u32 4, %s25
        %v210 = vld [vmem:[%s185] sm:$0xf]
        %v211 = vld [vmem:[%s185 + $0x10] sm:$0xf]
        %v212 = vld [vmem:[%s185 + $0x20] sm:$0xf]
        %v213 = vld [vmem:[%s185 + $0x30] sm:$0xf]
        %vm214 = vcmask 27648
        %215 = vst.msk [vmem:[#allocation2] sm:$0xf] %vm214, %v210
        %216 = vst.msk [vmem:[#allocation2 + $0x4] sm:$0xf] %vm214, %v211
        %217 = vst.msk [vmem:[#allocation2 + $0x8] sm:$0xf] %vm214, %v212
        %218 = vst.msk [vmem:[#allocation2 + $0xc] sm:$0xf] %vm214, %v213
        %s219 = scalar_lea.vmem %s185, 4 [#allocation3]
        %v220 = vld [vmem:[%s219] sm:$0xf]
        %v221 = vld [vmem:[%s219 + $0x10] sm:$0xf]
        %v222 = vld [vmem:[%s219 + $0x20] sm:$0xf]
        %v223 = vld [vmem:[%s219 + $0x30] sm:$0xf]
        %228 = vrot.lane.b32.xlu0 %v220, 4
        %v229 = vpop.permute.xlu0 %228
        %230 = vrot.lane.b32.xlu0 %v221, 4
        %v231 = vpop.permute.xlu0 %230
        %232 = vrot.lane.b32.xlu0 %v222, 4
        %v233 = vpop.permute.xlu0 %232
        %234 = vrot.lane.b32.xlu0 %v223, 4
        %v235 = vpop.permute.xlu0 %234
        %vm240 = vcmask 60448
        %241 = vst.msk [vmem:[#allocation2] sm:$0xf] %vm240, %v229
        %242 = vst.msk [vmem:[#allocation2 + $0x4] sm:$0xf] %vm240, %v231
        %243 = vst.msk [vmem:[#allocation2 + $0x8] sm:$0xf] %vm240, %v233
        %244 = vst.msk [vmem:[#allocation2 + $0xc] sm:$0xf] %vm240, %v235
        %s245 = scalar_lea.vmem %s185, 8 [#allocation3]
        %v246 = vld [vmem:[%s245] sm:$0xf]
        %v247 = vld [vmem:[%s245 + $0x10] sm:$0xf]
        %v248 = vld [vmem:[%s245 + $0x20] sm:$0xf]
        %v249 = vld [vmem:[%s245 + $0x30] sm:$0xf]
        %254 = vrot.lane.b32.xlu0 %v246, 8
        %v255 = vpop.permute.xlu0 %254
        %256 = vrot.lane.b32.xlu0 %v247, 8
        %v257 = vpop.permute.xlu0 %256
        %258 = vrot.lane.b32.xlu0 %v248, 8
        %v259 = vpop.permute.xlu0 %258
        %260 = vrot.lane.b32.xlu0 %v249, 8
        %v261 = vpop.permute.xlu0 %260
        %vm266 = vcmask 93248
        %267 = vst.msk [vmem:[#allocation2] sm:$0xf] %vm266, %v255
        %268 = vst.msk [vmem:[#allocation2 + $0x4] sm:$0xf] %vm266, %v257
        %269 = vst.msk [vmem:[#allocation2 + $0x8] sm:$0xf] %vm266, %v259
        %270 = vst.msk [vmem:[#allocation2 + $0xc] sm:$0xf] %vm266, %v261
        %s271 = scalar_lea.vmem %s185, 12 [#allocation3]
        %v272 = vld [vmem:[%s271] sm:$0xf]
        %v273 = vld [vmem:[%s271 + $0x10] sm:$0xf]
        %v274 = vld [vmem:[%s271 + $0x20] sm:$0xf]
        %v275 = vld [vmem:[%s271 + $0x30] sm:$0xf]
        %280 = vrot.lane.b32.xlu0 %v272, 12
        %v281 = vpop.permute.xlu0 %280
        %282 = vrot.lane.b32.xlu0 %v273, 12
        %v283 = vpop.permute.xlu0 %282
        %284 = vrot.lane.b32.xlu0 %v274, 12
        %v285 = vpop.permute.xlu0 %284
        %286 = vrot.lane.b32.xlu0 %v275, 12
        %v287 = vpop.permute.xlu0 %286
        %vm292 = vcmask 126048
        %293 = vst.msk [vmem:[#allocation2] sm:$0xf] %vm292, %v281
        %294 = vst.msk [vmem:[#allocation2 + $0x4] sm:$0xf] %vm292, %v283
        %295 = vst.msk [vmem:[#allocation2 + $0x8] sm:$0xf] %vm292, %v285
        %296 = vst.msk [vmem:[#allocation2 + $0xc] sm:$0xf] %vm292, %v287
        %s297 = scalar_lea.vmem %s185, 64 [#allocation3]
        %v298 = vld [vmem:[%s297] sm:$0xf]
        %v299 = vld [vmem:[%s297 + $0x10] sm:$0xf]
        %v300 = vld [vmem:[%s297 + $0x20] sm:$0xf]
        %v301 = vld [vmem:[%s297 + $0x30] sm:$0xf]
        %306 = vrot.lane.b32.xlu0 %v298, 16
        %v307 = vpop.permute.xlu0 %306
        %308 = vrot.lane.b32.xlu0 %v299, 16
        %v309 = vpop.permute.xlu0 %308
        %310 = vrot.lane.b32.xlu0 %v300, 16
        %v311 = vpop.permute.xlu0 %310
        %312 = vrot.lane.b32.xlu0 %v301, 16
        %v313 = vpop.permute.xlu0 %312
        %vm318 = vcmask 158848
        %319 = vst.msk [vmem:[#allocation2] sm:$0xf] %vm318, %v307
        %320 = vst.msk [vmem:[#allocation2 + $0x4] sm:$0xf] %vm318, %v309
        %321 = vst.msk [vmem:[#allocation2 + $0x8] sm:$0xf] %vm318, %v311
        %322 = vst.msk [vmem:[#allocation2 + $0xc] sm:$0xf] %vm318, %v313
        %s323 = scalar_lea.vmem %s185, 68 [#allocation3]
        %v324 = vld [vmem:[%s323] sm:$0xf]
        %v325 = vld [vmem:[%s323 + $0x10] sm:$0xf]
        %v326 = vld [vmem:[%s323 + $0x20] sm:$0xf]
        %v327 = vld [vmem:[%s323 + $0x30] sm:$0xf]
        %332 = vrot.lane.b32.xlu0 %v324, 20
        %v333 = vpop.permute.xlu0 %332
        %334 = vrot.lane.b32.xlu0 %v325, 20
        %v335 = vpop.permute.xlu0 %334
        %336 = vrot.lane.b32.xlu0 %v326, 20
        %v337 = vpop.permute.xlu0 %336
        %338 = vrot.lane.b32.xlu0 %v327, 20
        %v339 = vpop.permute.xlu0 %338
        %vm344 = vcmask 191648
        %345 = vst.msk [vmem:[#allocation2] sm:$0xf] %vm344, %v333
        %346 = vst.msk [vmem:[#allocation2 + $0x4] sm:$0xf] %vm344, %v335
        %347 = vst.msk [vmem:[#allocation2 + $0x8] sm:$0xf] %vm344, %v337
        %348 = vst.msk [vmem:[#allocation2 + $0xc] sm:$0xf] %vm344, %v339
        %s349 = scalar_lea.vmem %s185, 72 [#allocation3]
        %v350 = vld [vmem:[%s349] sm:$0xf]
        %v351 = vld [vmem:[%s349 + $0x10] sm:$0xf]
        %v352 = vld [vmem:[%s349 + $0x20] sm:$0xf]
        %v353 = vld [vmem:[%s349 + $0x30] sm:$0xf]
        %358 = vrot.lane.b32.xlu0 %v350, 24
        %v359 = vpop.permute.xlu0 %358
        %360 = vrot.lane.b32.xlu0 %v351, 24
        %v361 = vpop.permute.xlu0 %360
        %362 = vrot.lane.b32.xlu0 %v352, 24
        %v363 = vpop.permute.xlu0 %362
        %364 = vrot.lane.b32.xlu0 %v353, 24
        %v365 = vpop.permute.xlu0 %364
        %vm370 = vcmask 224448
        %371 = vst.msk [vmem:[#allocation2] sm:$0xf] %vm370, %v359
        %372 = vst.msk [vmem:[#allocation2 + $0x4] sm:$0xf] %vm370, %v361
        %373 = vst.msk [vmem:[#allocation2 + $0x8] sm:$0xf] %vm370, %v363
        %374 = vst.msk [vmem:[#allocation2 + $0xc] sm:$0xf] %vm370, %v365
        %s375 = scalar_lea.vmem %s185, 76 [#allocation3]
        %v376 = vld [vmem:[%s375] sm:$0xf]
        %v377 = vld [vmem:[%s375 + $0x10] sm:$0xf]
        %v378 = vld [vmem:[%s375 + $0x20] sm:$0xf]
        %v379 = vld [vmem:[%s375 + $0x30] sm:$0xf]
        %384 = vrot.lane.b32.xlu0 %v376, 28
        %v385 = vpop.permute.xlu0 %384
        %386 = vrot.lane.b32.xlu0 %v377, 28
        %v387 = vpop.permute.xlu0 %386
        %388 = vrot.lane.b32.xlu0 %v378, 28
        %v389 = vpop.permute.xlu0 %388
        %390 = vrot.lane.b32.xlu0 %v379, 28
        %v391 = vpop.permute.xlu0 %390
        %vm396 = vcmask 257248
        %397 = vst.msk [vmem:[#allocation2] sm:$0xf] %vm396, %v385
        %398 = vst.msk [vmem:[#allocation2 + $0x4] sm:$0xf] %vm396, %v387
        %399 = vst.msk [vmem:[#allocation2 + $0x8] sm:$0xf] %vm396, %v389
        %400 = vst.msk [vmem:[#allocation2 + $0xc] sm:$0xf] %vm396, %v391
        %s401 = scalar_lea.vmem %s185, 128 [#allocation3]
        %v402 = vld [vmem:[%s401] sm:$0xf]
        %v403 = vld [vmem:[%s401 + $0x10] sm:$0xf]
        %v404 = vld [vmem:[%s401 + $0x20] sm:$0xf]
        %v405 = vld [vmem:[%s401 + $0x30] sm:$0xf]
        %410 = vrot.lane.b32.xlu0 %v402, 32
        %v411 = vpop.permute.xlu0 %410
        %412 = vrot.lane.b32.xlu0 %v403, 32
        %v413 = vpop.permute.xlu0 %412
        %414 = vrot.lane.b32.xlu0 %v404, 32
        %v415 = vpop.permute.xlu0 %414
        %416 = vrot.lane.b32.xlu0 %v405, 32
        %v417 = vpop.permute.xlu0 %416
        %vm422 = vcmask 290048
        %423 = vst.msk [vmem:[#allocation2] sm:$0xf] %vm422, %v411
        %424 = vst.msk [vmem:[#allocation2 + $0x4] sm:$0xf] %vm422, %v413
        %425 = vst.msk [vmem:[#allocation2 + $0x8] sm:$0xf] %vm422, %v415
        %426 = vst.msk [vmem:[#allocation2 + $0xc] sm:$0xf] %vm422, %v417
        %s427 = scalar_lea.vmem %s185, 132 [#allocation3]
        %v428 = vld [vmem:[%s427] sm:$0xf]
        %v429 = vld [vmem:[%s427 + $0x10] sm:$0xf]
        %v430 = vld [vmem:[%s427 + $0x20] sm:$0xf]
        %v431 = vld [vmem:[%s427 + $0x30] sm:$0xf]
        %436 = vrot.lane.b32.xlu0 %v428, 36
        %v437 = vpop.permute.xlu0 %436
        %438 = vrot.lane.b32.xlu0 %v429, 36
        %v439 = vpop.permute.xlu0 %438
        %440 = vrot.lane.b32.xlu0 %v430, 36
        %v441 = vpop.permute.xlu0 %440
        %442 = vrot.lane.b32.xlu0 %v431, 36
        %v443 = vpop.permute.xlu0 %442
        %vm448 = vcmask 322848
        %449 = vst.msk [vmem:[#allocation2] sm:$0xf] %vm448, %v437
        %450 = vst.msk [vmem:[#allocation2 + $0x4] sm:$0xf] %vm448, %v439
        %451 = vst.msk [vmem:[#allocation2 + $0x8] sm:$0xf] %vm448, %v441
        %452 = vst.msk [vmem:[#allocation2 + $0xc] sm:$0xf] %vm448, %v443
        %s453 = scalar_lea.vmem %s185, 136 [#allocation3]
        %v454 = vld [vmem:[%s453] sm:$0xf]
        %v455 = vld [vmem:[%s453 + $0x10] sm:$0xf]
        %v456 = vld [vmem:[%s453 + $0x20] sm:$0xf]
        %v457 = vld [vmem:[%s453 + $0x30] sm:$0xf]
        %462 = vrot.lane.b32.xlu0 %v454, 40
        %v463 = vpop.permute.xlu0 %462
        %464 = vrot.lane.b32.xlu0 %v455, 40
        %v465 = vpop.permute.xlu0 %464
        %466 = vrot.lane.b32.xlu0 %v456, 40
        %v467 = vpop.permute.xlu0 %466
        %468 = vrot.lane.b32.xlu0 %v457, 40
        %v469 = vpop.permute.xlu0 %468
        %vm474 = vcmask 355648
        %475 = vst.msk [vmem:[#allocation2] sm:$0xf] %vm474, %v463
        %476 = vst.msk [vmem:[#allocation2 + $0x4] sm:$0xf] %vm474, %v465
        %477 = vst.msk [vmem:[#allocation2 + $0x8] sm:$0xf] %vm474, %v467
        %478 = vst.msk [vmem:[#allocation2 + $0xc] sm:$0xf] %vm474, %v469
        %s479 = scalar_lea.vmem %s185, 140 [#allocation3]
        %v480 = vld [vmem:[%s479] sm:$0xf]
        %v481 = vld [vmem:[%s479 + $0x10] sm:$0xf]
        %v482 = vld [vmem:[%s479 + $0x20] sm:$0xf]
        %v483 = vld [vmem:[%s479 + $0x30] sm:$0xf]
        %488 = vrot.lane.b32.xlu0 %v480, 44
        %v489 = vpop.permute.xlu0 %488
        %490 = vrot.lane.b32.xlu0 %v481, 44
        %v491 = vpop.permute.xlu0 %490
        %492 = vrot.lane.b32.xlu0 %v482, 44
        %v493 = vpop.permute.xlu0 %492
        %494 = vrot.lane.b32.xlu0 %v483, 44
        %v495 = vpop.permute.xlu0 %494
        %vm500 = vcmask 388448
        %501 = vst.msk [vmem:[#allocation2] sm:$0xf] %vm500, %v489
        %502 = vst.msk [vmem:[#allocation2 + $0x4] sm:$0xf] %vm500, %v491
        %503 = vst.msk [vmem:[#allocation2 + $0x8] sm:$0xf] %vm500, %v493
        %504 = vst.msk [vmem:[#allocation2 + $0xc] sm:$0xf] %vm500, %v495
        %s505 = scalar_lea.vmem %s185, 192 [#allocation3]
        %v506 = vld [vmem:[%s505] sm:$0xf]
        %v507 = vld [vmem:[%s505 + $0x10] sm:$0xf]
        %v508 = vld [vmem:[%s505 + $0x20] sm:$0xf]
        %v509 = vld [vmem:[%s505 + $0x30] sm:$0xf]
        %514 = vrot.lane.b32.xlu0 %v506, 48
        %v515 = vpop.permute.xlu0 %514
        %516 = vrot.lane.b32.xlu0 %v507, 48
        %v517 = vpop.permute.xlu0 %516
        %518 = vrot.lane.b32.xlu0 %v508, 48
        %v519 = vpop.permute.xlu0 %518
        %520 = vrot.lane.b32.xlu0 %v509, 48
        %v521 = vpop.permute.xlu0 %520
        %vm526 = vcmask 421248
        %527 = vst.msk [vmem:[#allocation2] sm:$0xf] %vm526, %v515
        %528 = vst.msk [vmem:[#allocation2 + $0x4] sm:$0xf] %vm526, %v517
        %529 = vst.msk [vmem:[#allocation2 + $0x8] sm:$0xf] %vm526, %v519
        %530 = vst.msk [vmem:[#allocation2 + $0xc] sm:$0xf] %vm526, %v521
        %s531 = scalar_lea.vmem %s185, 196 [#allocation3]
        %v532 = vld [vmem:[%s531] sm:$0xf]
        %v533 = vld [vmem:[%s531 + $0x10] sm:$0xf]
        %v534 = vld [vmem:[%s531 + $0x20] sm:$0xf]
        %v535 = vld [vmem:[%s531 + $0x30] sm:$0xf]
        %540 = vrot.lane.b32.xlu0 %v532, 52
        %v541 = vpop.permute.xlu0 %540
        %542 = vrot.lane.b32.xlu0 %v533, 52
        %v543 = vpop.permute.xlu0 %542
        %544 = vrot.lane.b32.xlu0 %v534, 52
        %v545 = vpop.permute.xlu0 %544
        %546 = vrot.lane.b32.xlu0 %v535, 52
        %v547 = vpop.permute.xlu0 %546
        %vm552 = vcmask 454048
        %553 = vst.msk [vmem:[#allocation2] sm:$0xf] %vm552, %v541
        %554 = vst.msk [vmem:[#allocation2 + $0x4] sm:$0xf] %vm552, %v543
        %555 = vst.msk [vmem:[#allocation2 + $0x8] sm:$0xf] %vm552, %v545
        %556 = vst.msk [vmem:[#allocation2 + $0xc] sm:$0xf] %vm552, %v547
        %s557 = scalar_lea.vmem %s185, 200 [#allocation3]
        %v558 = vld [vmem:[%s557] sm:$0xf]
        %v559 = vld [vmem:[%s557 + $0x10] sm:$0xf]
        %v560 = vld [vmem:[%s557 + $0x20] sm:$0xf]
        %v561 = vld [vmem:[%s557 + $0x30] sm:$0xf]
        %566 = vrot.lane.b32.xlu0 %v558, 56
        %v567 = vpop.permute.xlu0 %566
        %568 = vrot.lane.b32.xlu0 %v559, 56
        %v569 = vpop.permute.xlu0 %568
        %570 = vrot.lane.b32.xlu0 %v560, 56
        %v571 = vpop.permute.xlu0 %570
        %572 = vrot.lane.b32.xlu0 %v561, 56
        %v573 = vpop.permute.xlu0 %572
        %vm578 = vcmask 486848
        %579 = vst.msk [vmem:[#allocation2] sm:$0xf] %vm578, %v567
        %580 = vst.msk [vmem:[#allocation2 + $0x4] sm:$0xf] %vm578, %v569
        %581 = vst.msk [vmem:[#allocation2 + $0x8] sm:$0xf] %vm578, %v571
        %582 = vst.msk [vmem:[#allocation2 + $0xc] sm:$0xf] %vm578, %v573
        %s583 = scalar_lea.vmem %s185, 204 [#allocation3]
        %v584 = vld [vmem:[%s583] sm:$0xf]
        %v585 = vld [vmem:[%s583 + $0x10] sm:$0xf]
        %v586 = vld [vmem:[%s583 + $0x20] sm:$0xf]
        %v587 = vld [vmem:[%s583 + $0x30] sm:$0xf]
        %592 = vrot.lane.b32.xlu0 %v584, 60
        %v593 = vpop.permute.xlu0 %592
        %594 = vrot.lane.b32.xlu0 %v585, 60
        %v595 = vpop.permute.xlu0 %594
        %596 = vrot.lane.b32.xlu0 %v586, 60
        %v597 = vpop.permute.xlu0 %596
        %598 = vrot.lane.b32.xlu0 %v587, 60
        %v599 = vpop.permute.xlu0 %598
        %vm604 = vcmask 519648
        %605 = vst.msk [vmem:[#allocation2] sm:$0xf] %vm604, %v593
        %606 = vst.msk [vmem:[#allocation2 + $0x4] sm:$0xf] %vm604, %v595
        %607 = vst.msk [vmem:[#allocation2 + $0x8] sm:$0xf] %vm604, %v597
        %608 = vst.msk [vmem:[#allocation2 + $0xc] sm:$0xf] %vm604, %v599
        %v609 = vld [vmem:[%s1] sm:$0xff]
        %v610 = vld [vmem:[%s1 + $0x8] sm:$0xff]
        %v611 = vld [vmem:[%s1 + $0x10] sm:$0xff]
        %v612 = vld [vmem:[%s1 + $0x18] sm:$0xff]
        %v613 = vld [vmem:[%s1 + $0x20] sm:$0xff]
        %v614 = vld [vmem:[%s1 + $0x28] sm:$0xff]
        %v615 = vld [vmem:[%s1 + $0x30] sm:$0xff]
        %v616 = vld [vmem:[%s1 + $0x38] sm:$0xff]
        %v617 = vld [vmem:[%s2] sm:$0x1]
        %v618 = vld [vmem:[#allocation2] sm:$0xf]
        %v620 = vlaneseq
        %v621 = vshrl.u32 %v620, 7
        %v622 = vsub.s32 0, %v621
        %v623 = vrot.slane %v617, %v622
        %vm625 = vcmask 523264
        %v627 = vsel %vm625, %v618, 0
        %629 = vmatprep.subr.mxu0 0.0
        %630 = vmatpush1.msra.mxu0 0.0
        %631 = vmatprep.subr.mxu0 0.0
        %632 = vmatpush1.msra.mxu0 0.0
        %633 = vmatprep.subr.mxu0 0.0
        %634 = vmatpush1.msra.mxu0 0.0
        %635 = vmatprep.subr.mxu0 0.0
        %636 = vmatpush1.msra.mxu0 0.0
        %637 = vmatprep.subr.mxu0 0.0
        %638 = vmatpush1.msra.mxu0 0.0
        %639 = vmatprep.subr.mxu0 0.0
        %640 = vmatpush1.msra.mxu0 0.0
        %641 = vmatprep.subr.mxu0 0.0
        %642 = vmatpush1.msra.mxu0 0.0
        %643 = vmatprep.subr.mxu0 0.0
        %644 = vmatpush1.msra.mxu0 0.0
        %645 = vmatprep.subr.mxu0 0.0
        %646 = vmatpush1.msra.mxu0 %v616
        %647 = vmatprep.subr.mxu0 0.0
        %648 = vmatpush1.msra.mxu0 %v615
        %649 = vmatprep.subr.mxu0 0.0
        %650 = vmatpush1.msra.mxu0 %v614
        %651 = vmatprep.subr.mxu0 0.0
        %652 = vmatpush1.msra.mxu0 %v613
        %653 = vmatprep.subr.mxu0 0.0
        %654 = vmatpush1.msra.mxu0 %v612
        %655 = vmatprep.subr.mxu0 0.0
        %656 = vmatpush1.msra.mxu0 %v611
        %657 = vmatprep.subr.mxu0 0.0
        %658 = vmatpush1.msra.mxu0 %v610
        %659 = vmatprep.subr.mxu0 0.0
        %660 = vmatpush1.msra.mxu0 %v609
        %661 = vmatprep.subr.mxu0 0.0
        %662 = vmatpush2.msra.mxu0 0.0
        %663 = vmatprep.subr.mxu0 0.0
        %664 = vmatpush2.msra.mxu0 0.0
        %665 = vmatprep.subr.mxu0 0.0
        %666 = vmatpush2.msra.mxu0 0.0
        %667 = vmatprep.subr.mxu0 0.0
        %668 = vmatpush2.msra.mxu0 0.0
        %669 = vmatprep.subr.mxu0 0.0
        %670 = vmatpush2.msra.mxu0 0.0
        %671 = vmatprep.subr.mxu0 0.0
        %672 = vmatpush2.msra.mxu0 0.0
        %673 = vmatprep.subr.mxu0 0.0
        %674 = vmatpush2.msra.mxu0 0.0
        %675 = vmatprep.subr.mxu0 0.0
        %676 = vmatpush2.msra.mxu0 0.0
        %677 = vmatprep.subr.mxu0 0.0
        %678 = vmatpush2.msra.mxu0 0.0
        %679 = vmatprep.subr.mxu0 0.0
        %680 = vmatpush2.msra.mxu0 0.0
        %681 = vmatprep.subr.mxu0 0.0
        %682 = vmatpush2.msra.mxu0 0.0
        %683 = vmatprep.subr.mxu0 0.0
        %684 = vmatpush2.msra.mxu0 0.0
        %685 = vmatprep.subr.mxu0 0.0
        %686 = vmatpush2.msra.mxu0 0.0
        %687 = vmatprep.subr.mxu0 0.0
        %688 = vmatpush2.msra.mxu0 0.0
        %689 = vmatprep.subr.mxu0 0.0
        %690 = vmatpush2.msra.mxu0 0.0
        %691 = vmatprep.subr.mxu0 0.0
        %692 = vmatpush2.msra.mxu0 0.0
        %693 = vmatprep.mubr.f32.mxu0 0.0
        %694 = vmatmul.mubr.f32.gmra.mxu0 %v627
        %v695 = vpop.f32.mrf.mxu0
        %v696 = vadd.f32 %v623, %v695
        %v697 = vpop.f32.mrf.mxu0
        %698 = vdwg.mxu0
        %vm699 = vcmask 257024
        %700 = vst.msk [vmem:[%s207] sm:$0xf] %vm699, %v696
        %s701 = scalar_lea.vmem [#allocation2], 4
        %v702 = vld [vmem:[%s701] sm:$0xf]
        %v704 = vsel %vm625, %v702, 0
        %706 = vmatprep.subr.mxu0 0.0
        %707 = vmatpush1.msra.mxu0 0.0
        %708 = vmatprep.subr.mxu0 0.0
        %709 = vmatpush1.msra.mxu0 0.0
        %710 = vmatprep.subr.mxu0 0.0
        %711 = vmatpush1.msra.mxu0 0.0
        %712 = vmatprep.subr.mxu0 0.0
        %713 = vmatpush1.msra.mxu0 0.0
        %714 = vmatprep.subr.mxu0 0.0
        %715 = vmatpush1.msra.mxu0 0.0
        %716 = vmatprep.subr.mxu0 0.0
        %717 = vmatpush1.msra.mxu0 0.0
        %718 = vmatprep.subr.mxu0 0.0
        %719 = vmatpush1.msra.mxu0 0.0
        %720 = vmatprep.subr.mxu0 0.0
        %721 = vmatpush1.msra.mxu0 0.0
        %722 = vmatprep.subr.mxu0 0.0
        %723 = vmatpush1.msra.mxu0 %v616
        %724 = vmatprep.subr.mxu0 0.0
        %725 = vmatpush1.msra.mxu0 %v615
        %726 = vmatprep.subr.mxu0 0.0
        %727 = vmatpush1.msra.mxu0 %v614
        %728 = vmatprep.subr.mxu0 0.0
        %729 = vmatpush1.msra.mxu0 %v613
        %730 = vmatprep.subr.mxu0 0.0
        %731 = vmatpush1.msra.mxu0 %v612
        %732 = vmatprep.subr.mxu0 0.0
        %733 = vmatpush1.msra.mxu0 %v611
        %734 = vmatprep.subr.mxu0 0.0
        %735 = vmatpush1.msra.mxu0 %v610
        %736 = vmatprep.subr.mxu0 0.0
        %737 = vmatpush1.msra.mxu0 %v609
        %738 = vmatprep.subr.mxu0 0.0
        %739 = vmatpush2.msra.mxu0 0.0
        %740 = vmatprep.subr.mxu0 0.0
        %741 = vmatpush2.msra.mxu0 0.0
        %742 = vmatprep.subr.mxu0 0.0
        %743 = vmatpush2.msra.mxu0 0.0
        %744 = vmatprep.subr.mxu0 0.0
        %745 = vmatpush2.msra.mxu0 0.0
        %746 = vmatprep.subr.mxu0 0.0
        %747 = vmatpush2.msra.mxu0 0.0
        %748 = vmatprep.subr.mxu0 0.0
        %749 = vmatpush2.msra.mxu0 0.0
        %750 = vmatprep.subr.mxu0 0.0
        %751 = vmatpush2.msra.mxu0 0.0
        %752 = vmatprep.subr.mxu0 0.0
        %753 = vmatpush2.msra.mxu0 0.0
        %754 = vmatprep.subr.mxu0 0.0
        %755 = vmatpush2.msra.mxu0 0.0
        %756 = vmatprep.subr.mxu0 0.0
        %757 = vmatpush2.msra.mxu0 0.0
        %758 = vmatprep.subr.mxu0 0.0
        %759 = vmatpush2.msra.mxu0 0.0
        %760 = vmatprep.subr.mxu0 0.0
        %761 = vmatpush2.msra.mxu0 0.0
        %762 = vmatprep.subr.mxu0 0.0
        %763 = vmatpush2.msra.mxu0 0.0
        %764 = vmatprep.subr.mxu0 0.0
        %765 = vmatpush2.msra.mxu0 0.0
        %766 = vmatprep.subr.mxu0 0.0
        %767 = vmatpush2.msra.mxu0 0.0
        %768 = vmatprep.subr.mxu0 0.0
        %769 = vmatpush2.msra.mxu0 0.0
        %770 = vmatprep.mubr.f32.mxu0 0.0
        %771 = vmatmul.mubr.f32.gmra.mxu0 %v704
        %v772 = vpop.f32.mrf.mxu0
        %v773 = vadd.f32 %v623, %v772
        %v774 = vpop.f32.mrf.mxu0
        %775 = vdwg.mxu0
        %s776 = scalar_lea.vmem %s207, 4 [#allocation6]
        %777 = vst.msk [vmem:[%s776] sm:$0xf] %vm699, %v773
        %s778 = scalar_lea.vmem [#allocation2], 8
        %v779 = vld [vmem:[%s778] sm:$0xf]
        %v781 = vsel %vm625, %v779, 0
        %783 = vmatprep.subr.mxu0 0.0
        %784 = vmatpush1.msra.mxu0 0.0
        %785 = vmatprep.subr.mxu0 0.0
        %786 = vmatpush1.msra.mxu0 0.0
        %787 = vmatprep.subr.mxu0 0.0
        %788 = vmatpush1.msra.mxu0 0.0
        %789 = vmatprep.subr.mxu0 0.0
        %790 = vmatpush1.msra.mxu0 0.0
        %791 = vmatprep.subr.mxu0 0.0
        %792 = vmatpush1.msra.mxu0 0.0
        %793 = vmatprep.subr.mxu0 0.0
        %794 = vmatpush1.msra.mxu0 0.0
        %795 = vmatprep.subr.mxu0 0.0
        %796 = vmatpush1.msra.mxu0 0.0
        %797 = vmatprep.subr.mxu0 0.0
        %798 = vmatpush1.msra.mxu0 0.0
        %799 = vmatprep.subr.mxu0 0.0
        %800 = vmatpush1.msra.mxu0 %v616
        %801 = vmatprep.subr.mxu0 0.0
        %802 = vmatpush1.msra.mxu0 %v615
        %803 = vmatprep.subr.mxu0 0.0
        %804 = vmatpush1.msra.mxu0 %v614
        %805 = vmatprep.subr.mxu0 0.0
        %806 = vmatpush1.msra.mxu0 %v613
        %807 = vmatprep.subr.mxu0 0.0
        %808 = vmatpush1.msra.mxu0 %v612
        %809 = vmatprep.subr.mxu0 0.0
        %810 = vmatpush1.msra.mxu0 %v611
        %811 = vmatprep.subr.mxu0 0.0
        %812 = vmatpush1.msra.mxu0 %v610
        %813 = vmatprep.subr.mxu0 0.0
        %814 = vmatpush1.msra.mxu0 %v609
        %815 = vmatprep.subr.mxu0 0.0
        %816 = vmatpush2.msra.mxu0 0.0
        %817 = vmatprep.subr.mxu0 0.0
        %818 = vmatpush2.msra.mxu0 0.0
        %819 = vmatprep.subr.mxu0 0.0
        %820 = vmatpush2.msra.mxu0 0.0
        %821 = vmatprep.subr.mxu0 0.0
        %822 = vmatpush2.msra.mxu0 0.0
        %823 = vmatprep.subr.mxu0 0.0
        %824 = vmatpush2.msra.mxu0 0.0
        %825 = vmatprep.subr.mxu0 0.0
        %826 = vmatpush2.msra.mxu0 0.0
        %827 = vmatprep.subr.mxu0 0.0
        %828 = vmatpush2.msra.mxu0 0.0
        %829 = vmatprep.subr.mxu0 0.0
        %830 = vmatpush2.msra.mxu0 0.0
        %831 = vmatprep.subr.mxu0 0.0
        %832 = vmatpush2.msra.mxu0 0.0
        %833 = vmatprep.subr.mxu0 0.0
        %834 = vmatpush2.msra.mxu0 0.0
        %835 = vmatprep.subr.mxu0 0.0
        %836 = vmatpush2.msra.mxu0 0.0
        %837 = vmatprep.subr.mxu0 0.0
        %838 = vmatpush2.msra.mxu0 0.0
        %839 = vmatprep.subr.mxu0 0.0
        %840 = vmatpush2.msra.mxu0 0.0
        %841 = vmatprep.subr.mxu0 0.0
        %842 = vmatpush2.msra.mxu0 0.0
        %843 = vmatprep.subr.mxu0 0.0
        %844 = vmatpush2.msra.mxu0 0.0
        %845 = vmatprep.subr.mxu0 0.0
        %846 = vmatpush2.msra.mxu0 0.0
        %847 = vmatprep.mubr.f32.mxu0 0.0
        %848 = vmatmul.mubr.f32.gmra.mxu0 %v781
        %v849 = vpop.f32.mrf.mxu0
        %v850 = vadd.f32 %v623, %v849
        %v851 = vpop.f32.mrf.mxu0
        %852 = vdwg.mxu0
        %s853 = scalar_lea.vmem %s207, 8 [#allocation6]
        %854 = vst.msk [vmem:[%s853] sm:$0xf] %vm699, %v850
        %s855 = scalar_lea.vmem [#allocation2], 12
        %v856 = vld [vmem:[%s855] sm:$0xf]
        %v858 = vsel %vm625, %v856, 0
        %860 = vmatprep.subr.mxu0 0.0
        %861 = vmatpush1.msra.mxu0 0.0
        %862 = vmatprep.subr.mxu0 0.0
        %863 = vmatpush1.msra.mxu0 0.0
        %864 = vmatprep.subr.mxu0 0.0
        %865 = vmatpush1.msra.mxu0 0.0
        %866 = vmatprep.subr.mxu0 0.0
        %867 = vmatpush1.msra.mxu0 0.0
        %868 = vmatprep.subr.mxu0 0.0
        %869 = vmatpush1.msra.mxu0 0.0
        %870 = vmatprep.subr.mxu0 0.0
        %871 = vmatpush1.msra.mxu0 0.0
        %872 = vmatprep.subr.mxu0 0.0
        %873 = vmatpush1.msra.mxu0 0.0
        %874 = vmatprep.subr.mxu0 0.0
        %875 = vmatpush1.msra.mxu0 0.0
        %876 = vmatprep.subr.mxu0 0.0
        %877 = vmatpush1.msra.mxu0 %v616
        %878 = vmatprep.subr.mxu0 0.0
        %879 = vmatpush1.msra.mxu0 %v615
        %880 = vmatprep.subr.mxu0 0.0
        %881 = vmatpush1.msra.mxu0 %v614
        %882 = vmatprep.subr.mxu0 0.0
        %883 = vmatpush1.msra.mxu0 %v613
        %884 = vmatprep.subr.mxu0 0.0
        %885 = vmatpush1.msra.mxu0 %v612
        %886 = vmatprep.subr.mxu0 0.0
        %887 = vmatpush1.msra.mxu0 %v611
        %888 = vmatprep.subr.mxu0 0.0
        %889 = vmatpush1.msra.mxu0 %v610
        %890 = vmatprep.subr.mxu0 0.0
        %891 = vmatpush1.msra.mxu0 %v609
        %892 = vmatprep.subr.mxu0 0.0
        %893 = vmatpush2.msra.mxu0 0.0
        %894 = vmatprep.subr.mxu0 0.0
        %895 = vmatpush2.msra.mxu0 0.0
        %896 = vmatprep.subr.mxu0 0.0
        %897 = vmatpush2.msra.mxu0 0.0
        %898 = vmatprep.subr.mxu0 0.0
        %899 = vmatpush2.msra.mxu0 0.0
        %900 = vmatprep.subr.mxu0 0.0
        %901 = vmatpush2.msra.mxu0 0.0
        %902 = vmatprep.subr.mxu0 0.0
        %903 = vmatpush2.msra.mxu0 0.0
        %904 = vmatprep.subr.mxu0 0.0
        %905 = vmatpush2.msra.mxu0 0.0
        %906 = vmatprep.subr.mxu0 0.0
        %907 = vmatpush2.msra.mxu0 0.0
        %908 = vmatprep.subr.mxu0 0.0
        %909 = vmatpush2.msra.mxu0 0.0
        %910 = vmatprep.subr.mxu0 0.0
        %911 = vmatpush2.msra.mxu0 0.0
        %912 = vmatprep.subr.mxu0 0.0
        %913 = vmatpush2.msra.mxu0 0.0
        %914 = vmatprep.subr.mxu0 0.0
        %915 = vmatpush2.msra.mxu0 0.0
        %916 = vmatprep.subr.mxu0 0.0
        %917 = vmatpush2.msra.mxu0 0.0
        %918 = vmatprep.subr.mxu0 0.0
        %919 = vmatpush2.msra.mxu0 0.0
        %920 = vmatprep.subr.mxu0 0.0
        %921 = vmatpush2.msra.mxu0 0.0
        %922 = vmatprep.subr.mxu0 0.0
        %923 = vmatpush2.msra.mxu0 0.0
        %924 = vmatprep.mubr.f32.mxu0 0.0
        %925 = vmatmul.mubr.f32.gmra.mxu0 %v858
        %v926 = vpop.f32.mrf.mxu0
        %v927 = vadd.f32 %v623, %v926
        %v928 = vpop.f32.mrf.mxu0
        %929 = vdwg.mxu0
        %s930 = scalar_lea.vmem %s207, 12 [#allocation6]
        %931 = vst.msk [vmem:[%s930] sm:$0xf] %vm699, %v927
        %s932 = sand.u32 %s112, 1
        %s933 = scalar_lea.sflag [#allocation5], %s932
        %s934 = sand.u32 %s112, 1
        %s935 = smul.addr %s934, 16
        %s936 = scalar_lea.vmem [#allocation6], %s935
        // Predicated region
        $region37: #{tpu_custom_call.1} parent=31 // pred_check
          %p937 = pneg %p122
        $region38: #{tpu_custom_call.1} parent=31 // pred_check_branch
          %939 = sbr.rel (%p937) target = $region40
        $region39: #{tpu_custom_call.1} parent=31 // pred_region
          %s940 = smul.u32 4, %s25
          %s942 = ssub.s32 256, 256
          %943 = vsyncadd %s933, %s942
          %s944 = smul.addr %s24, 4
          %s945 = sadd.s32 %s940, %s944
          %s946 = smul.addr %s945, 64
          %s947 = scalar_lea.hbm %s3, %s946
          %s948 = sshll.u32 %s936, 4
          %s949 = int_to_ptr.vmem [resolvable:$true] %s948
          %954 = dma.vmem_to_hbm [thread:$0]  %s949, 256, %s947, %s933, 64, 64, 4
        $region40: #{tpu_custom_call.1} parent=31 // pred_fallthru
          _
      $region32: #{tpu_custom_call.1} parent=5 // pred_fallthru
        _
      %p955 = scmp.le.s32.totalorder 2, %s15
      // Predicated region
      $region41: #{tpu_custom_call.1} parent=5 // pred_check
        %p956 = pneg %p955
      $region42: #{tpu_custom_call.1} parent=5 // pred_check_branch
        %958 = sbr.rel (%p956) target = $region44
      $region43: #{tpu_custom_call.1} parent=5 // pred_region
        %s959 = ssub.s32 %s15, 2
        // Predicated region
        $region45: #{tpu_custom_call.1} parent=43 // pred_check
          %p960 = pneg %p128
        $region46: #{tpu_custom_call.1} parent=43 // pred_check_branch
          %962 = sbr.rel (%p960) target = $region48
        $region47: #{tpu_custom_call.1} parent=43 // pred_region
          %s963 = sand.u32 %s113, 1
          %s964 = scalar_lea.sflag [#allocation5], %s963
          %s965 = sand.u32 %s113, 1
          %s966 = smul.addr %s965, 16
          %s967 = scalar_lea.vmem [#allocation6], %s966
          %968 = dma.done %s964, 256
        $region48: #{tpu_custom_call.1} parent=43 // pred_fallthru
          _
      $region44: #{tpu_custom_call.1} parent=5 // pred_fallthru
        _
    $region6: #{tpu_custom_call.1} parent=1 // loop_footer
      %s19 = sadd.s32 1, %s15
    $region7: #{tpu_custom_call.1} parent=1 // loop_footer_branch
      %14 = sbr.rel target = $region3
    $region8: #{tpu_custom_call.1} parent=1 // loop_exit
      _
    %969 = vsyncpa [#allocation4], 1
    %s970 = scalar_lea.sflag [#allocation4], 1
    %971 = vsyncpa %s970, 1
    %972 = vsyncpa [#allocation5], 1
    %s973 = scalar_lea.sflag [#allocation5], 1
    %974 = vsyncpa %s973, 1

</llo_original>
